<compile_context>
chip_gen: v7x
topology: tpu7x:2x2x1
jax: 0.10.0
libtpu: 0.0.40
codegen_flags: <defaults>
</compile_context>

<pallas_src>
import functools

import jax
import jax.numpy as jnp
from jax.experimental import pallas as pl
from jax.experimental.pallas import tpu as pltpu

_NEG = -1e30          # effectively -inf for padded logit columns (keeps arithmetic finite)
_MAX_TILE_B = 4096    # default upper bound for the batch tile


def _round_up(x, m):
    return ((x + m - 1) // m) * m


def _choose_tile(B, max_tile=_MAX_TILE_B):
    """Pick a batch tile >= 8 rows that (nearly) divides B, capped at max_tile."""
    if B <= max_tile:
        return _round_up(max(B, 1), 8)
    n_tiles = pl.cdiv(B, max_tile)
    return _round_up(pl.cdiv(B, n_tiles), 8)


def _actor_kernel(x_ref, w1_ref, b1_ref, w2_ref, b2_ref, w3_ref, b3_ref, o_ref, *, ac_space):
    """One (TILE_B, *) batch tile: fused matmuls + ReLU + numerically-stable log_softmax.

    Weights arrive already in their compute dtype (f32 or pre-cast bf16); only x is cast
    on-core (it is tiny: 16 lanes).  Accumulation and the softmax are always f32.
    """
    wd = w1_ref.dtype
    x = x_ref[...].astype(wd)

    h = jnp.dot(x, w1_ref[...], preferred_element_type=jnp.float32) + b1_ref[...]
    h = jnp.maximum(h, 0.0)

    h = jnp.dot(h.astype(wd), w2_ref[...], preferred_element_type=jnp.float32) + b2_ref[...]
    h = jnp.maximum(h, 0.0)

    logits = jnp.dot(h.astype(wd), w3_ref[...], preferred_element_type=jnp.float32) + b3_ref[...]

    # log_softmax over the 128-lane-padded axis; padded columns carry a -1e30 bias so
    # exp(shifted) == 0 there and the real columns are exact.
    m = jnp.max(logits, axis=-1, keepdims=True)
    shifted = logits - m
    lse = jnp.log(jnp.sum(jnp.exp(shifted), axis=-1, keepdims=True))

    # Store only the real columns (last dim == full output array dim -> legal block shape).
    o_ref[...] = (shifted - lse)[:, :ac_space].astype(o_ref.dtype)


def prepare_params(params, *, compute_dtype=jnp.float32):
    """One-time parameter prep: pad the output layer to 128 lanes, optionally pre-cast
    the weight matrices to bf16 (v6e/v7x).  Biases stay f32 (f32 accumulation/softmax).

    Returns (prepared_params_dict, ac_space).  Call once and reuse across forward calls.
    """
    w3, b3 = params["w3"], params["b3"]
    ac_space = w3.shape[1]
    out_pad = _round_up(ac_space, 128)
    w3p = jnp.pad(w3, ((0, 0), (0, out_pad - ac_space)))
    b3p = jnp.pad(b3, ((0, 0), (0, out_pad - ac_space)), constant_values=_NEG)
    prepared = {
        "w1": params["w1"].astype(compute_dtype),
        "b1": params["b1"].astype(jnp.float32),
        "w2": params["w2"].astype(compute_dtype),
        "b2": params["b2"].astype(jnp.float32),
        "w3": w3p.astype(compute_dtype),
        "b3": b3p.astype(jnp.float32),
    }
    return prepared, ac_space


@functools.partial(jax.jit, static_argnames=("ac_space", "tile_b"))
def actor_forward(ob, params, ac_space, *, tile_b=None):
    """ob: (B, ob_space) float32; params: output of prepare_params (w3/b3 pre-padded)."""
    w1, b1, w2, b2, w3, b3 = (params["w1"], params["b1"], params["w2"],
                              params["b2"], params["w3"], params["b3"])
    B, ob_space = ob.shape
    hidden = w1.shape[1]
    out_pad = w3.shape[1]

    # ---- batch tile: large (amortize ~0.35 us/step overhead), (nearly) divides B ----
    if tile_b is None:
        tile_b = _choose_tile(B)
    b_pad = _round_up(B, tile_b)
    grid = (b_pad // tile_b,)

    x = ob if b_pad == B else jnp.pad(ob, ((0, b_pad - B), (0, 0)))

    itemsize = jnp.dtype(w1.dtype).itemsize
    flops = 2 * b_pad * (ob_space * hidden + hidden * hidden + hidden * out_pad)
    transcendentals = b_pad * (out_pad + 1)                      # exp per logit + log per row
    bytes_accessed = (x.size * 4                                 # x read (f32)
                      + (w1.size + w2.size + w3.size) * itemsize # weights read once (resident)
                      + (b1.size + b2.size + b3.size) * 4
                      + b_pad * ac_space * 4)                    # slimmed output write

    kernel = functools.partial(_actor_kernel, ac_space=ac_space)

    out = pl.pallas_call(
        kernel,
        out_shape=jax.ShapeDtypeStruct((b_pad, ac_space), jnp.float32),
        grid=grid,
        in_specs=[
            pl.BlockSpec((tile_b, ob_space), lambda i: (i, 0)),   # x: tiled over batch
            pl.BlockSpec((ob_space, hidden), lambda i: (0, 0)),   # w1: VMEM-resident
            pl.BlockSpec((1, hidden), lambda i: (0, 0)),          # b1
            pl.BlockSpec((hidden, hidden), lambda i: (0, 0)),     # w2
            pl.BlockSpec((1, hidden), lambda i: (0, 0)),          # b2
            pl.BlockSpec((hidden, out_pad), lambda i: (0, 0)),    # w3 (lane-padded)
            pl.BlockSpec((1, out_pad), lambda i: (0, 0)),         # b3 (lane-padded)
        ],
        out_specs=pl.BlockSpec((tile_b, ac_space), lambda i: (i, 0)),  # slim, real cols only
        compiler_params=pltpu.CompilerParams(
            dimension_semantics=("parallel",),                    # megacore sharding on v7x
            vmem_limit_bytes=32 * 1024 * 1024),                   # headroom for 4K-row tiles
        cost_estimate=pl.CostEstimate(
            flops=int(flops),
            transcendentals=int(transcendentals),
            bytes_accessed=int(bytes_accessed)),
    )(x, w1, b1, w2, b2, w3, b3)

    return out if b_pad == B else out[:B]


def init_params(key, ob_space, ac_space, hidden=32):
    """Deterministic init mimicking nn.Linear's uniform(-1/sqrt(fan_in), 1/sqrt(fan_in))."""
    ks = jax.random.split(key, 6)

    def linear(kw, kb, fan_in, fan_out):
        bound = 1.0 / jnp.sqrt(fan_in)
        w = jax.random.uniform(kw, (fan_in, fan_out), jnp.float32, -bound, bound)
        b = jax.random.uniform(kb, (1, fan_out), jnp.float32, -bound, bound)
        return w, b

    w1, b1 = linear(ks[0], ks[1], ob_space, hidden)
    w2, b2 = linear(ks[2], ks[3], hidden, hidden)
    w3, b3 = linear(ks[4], ks[5], hidden, ac_space)
    return {"w1": w1, "b1": b1, "w2": w2, "b2": b2, "w3": w3, "b3": b3}


def _reference(ob, p):
    h = jnp.maximum(ob @ p["w1"] + p["b1"], 0.0)
    h = jnp.maximum(h @ p["w2"] + p["b2"], 0.0)
    logits = h @ p["w3"] + p["b3"]
    return jax.nn.log_softmax(logits, axis=-1)


if __name__ == "__main__":
    key = jax.random.PRNGKey(0)
    k_in, k_param, k_big = jax.random.split(key, 3)

    B, ob_space, ac_space = 2, 16, 8
    ob = jax.random.normal(k_in, (B, ob_space), dtype=jnp.float32)
    raw_params = init_params(k_param, ob_space, ac_space)

    # One-time parameter prep (128-lane padding of the output layer), reused across calls.
    params, ac = prepare_params(raw_params)
    params = jax.tree.map(jax.block_until_ready, params)

    # Small-batch path (module spec shapes): B=2 runs as one 8-row tile.
    out = jax.block_until_ready(actor_forward(ob, params, ac))
    ref = _reference(ob, raw_params)
    assert out.shape == (B, ac_space)
    assert jnp.allclose(out, ref, atol=1e-5, rtol=1e-5), "mismatch vs pure-JAX reference (B=2)"

    # Multi-tile path: non-multiple batch, VMEM-resident weights across grid steps.
    B2 = 300
    ob2 = jax.random.normal(k_big, (B2, ob_space), dtype=jnp.float32)
    out2 = jax.block_until_ready(actor_forward(ob2, params, ac, tile_b=128))
    ref2 = _reference(ob2, raw_params)
    assert out2.shape == (B2, ac_space)
    assert jnp.allclose(out2, ref2, atol=1e-4, rtol=1e-4), "mismatch vs pure-JAX reference (B=300)"

    # Large-batch path with the default (big, near-dividing) tile choice.
    B3 = 5000
    ob3 = jax.random.normal(k_big, (B3, ob_space), dtype=jnp.float32)
    out3 = jax.block_until_ready(actor_forward(ob3, params, ac))
    ref3 = _reference(ob3, raw_params)
    assert out3.shape == (B3, ac_space)
    assert jnp.allclose(out3, ref3, atol=1e-4, rtol=1e-4), "mismatch vs pure-JAX reference (B=5000)"

    print("KERNEL_OK")
</pallas_src>

<mosaic_0001>
module attributes {stable_mosaic.version = 11 : i64} {
  func.func @_actor_kernel(%arg0: i32, %arg1: memref<8x16xf32, #tpu.memory_space<vmem>>, %arg2: memref<16x32xf32, #tpu.memory_space<vmem>>, %arg3: memref<1x32xf32, #tpu.memory_space<vmem>>, %arg4: memref<32x32xf32, #tpu.memory_space<vmem>>, %arg5: memref<1x32xf32, #tpu.memory_space<vmem>>, %arg6: memref<32x128xf32, #tpu.memory_space<vmem>>, %arg7: memref<1x128xf32, #tpu.memory_space<vmem>>, %arg8: memref<8x8xf32, #tpu.memory_space<vmem>>) attributes {dimension_semantics = [#tpu.dimension_semantics<parallel>], iteration_bounds = array<i64: 1>, scalar_prefetch = 0 : i64, scratch_operands = 0 : i64, tpu.core_type = #tpu.core_type<tc>, window_params = [{transform_indices = @transform_0, window_bounds = array<i64: 8, 16>}, {pipeline_mode = #tpu.pipeline_mode<synchronous>, transform_indices = @transform_1, window_bounds = array<i64: 16, 32>}, {pipeline_mode = #tpu.pipeline_mode<synchronous>, transform_indices = @transform_2, window_bounds = array<i64: 1, 32>}, {pipeline_mode = #tpu.pipeline_mode<synchronous>, transform_indices = @transform_3, window_bounds = array<i64: 32, 32>}, {pipeline_mode = #tpu.pipeline_mode<synchronous>, transform_indices = @transform_4, window_bounds = array<i64: 1, 32>}, {pipeline_mode = #tpu.pipeline_mode<synchronous>, transform_indices = @transform_5, window_bounds = array<i64: 32, 128>}, {pipeline_mode = #tpu.pipeline_mode<synchronous>, transform_indices = @transform_6, window_bounds = array<i64: 1, 128>}, {transform_indices = @transform_7, window_bounds = array<i64: 8, 8>}]} {
    %c0 = arith.constant 0 : index
    %c0_0 = arith.constant 0 : index
    %0 = vector.load %arg1[%c0, %c0_0] : memref<8x16xf32, #tpu.memory_space<vmem>>, vector<8x16xf32>
    %c0_1 = arith.constant 0 : index
    %c0_2 = arith.constant 0 : index
    %1 = vector.load %arg2[%c0_1, %c0_2] : memref<16x32xf32, #tpu.memory_space<vmem>>, vector<16x32xf32>
    %cst = arith.constant dense<0.000000e+00> : vector<8x32xf32>
    %2 = tpu.matmul %0, %1, %cst {dimension_numbers = #tpu.dot_dimension_numbers<[1], [0], [0], [1], [0, 0, 1, 1], [], []>} : vector<8x16xf32>, vector<16x32xf32>, vector<8x32xf32> -> vector<8x32xf32>
    %c0_3 = arith.constant 0 : index
    %c0_4 = arith.constant 0 : index
    %3 = vector.load %arg3[%c0_3, %c0_4] : memref<1x32xf32, #tpu.memory_space<vmem>>, vector<1x32xf32>
    %4 = vector.broadcast %3 : vector<1x32xf32> to vector<8x32xf32>
    %5 = arith.addf %2, %4 : vector<8x32xf32>
    %cst_5 = arith.constant 0.000000e+00 : f32
    %6 = vector.broadcast %cst_5 : f32 to vector<8x32xf32>
    %7 = arith.maximumf %5, %6 : vector<8x32xf32>
    %c0_6 = arith.constant 0 : index
    %c0_7 = arith.constant 0 : index
    %8 = vector.load %arg4[%c0_6, %c0_7] : memref<32x32xf32, #tpu.memory_space<vmem>>, vector<32x32xf32>
    %cst_8 = arith.constant dense<0.000000e+00> : vector<8x32xf32>
    %9 = tpu.matmul %7, %8, %cst_8 {dimension_numbers = #tpu.dot_dimension_numbers<[1], [0], [0], [1], [0, 0, 1, 1], [], []>} : vector<8x32xf32>, vector<32x32xf32>, vector<8x32xf32> -> vector<8x32xf32>
    %c0_9 = arith.constant 0 : index
    %c0_10 = arith.constant 0 : index
    %10 = vector.load %arg5[%c0_9, %c0_10] : memref<1x32xf32, #tpu.memory_space<vmem>>, vector<1x32xf32>
    %11 = vector.broadcast %10 : vector<1x32xf32> to vector<8x32xf32>
    %12 = arith.addf %9, %11 : vector<8x32xf32>
    %cst_11 = arith.constant 0.000000e+00 : f32
    %13 = vector.broadcast %cst_11 : f32 to vector<8x32xf32>
    %14 = arith.maximumf %12, %13 : vector<8x32xf32>
    %c0_12 = arith.constant 0 : index
    %c0_13 = arith.constant 0 : index
    %15 = vector.load %arg6[%c0_12, %c0_13] : memref<32x128xf32, #tpu.memory_space<vmem>>, vector<32x128xf32>
    %cst_14 = arith.constant dense<0.000000e+00> : vector<8x128xf32>
    %16 = tpu.matmul %14, %15, %cst_14 {dimension_numbers = #tpu.dot_dimension_numbers<[1], [0], [0], [1], [0, 0, 1, 1], [], []>} : vector<8x32xf32>, vector<32x128xf32>, vector<8x128xf32> -> vector<8x128xf32>
    %c0_15 = arith.constant 0 : index
    %c0_16 = arith.constant 0 : index
    %17 = vector.load %arg7[%c0_15, %c0_16] : memref<1x128xf32, #tpu.memory_space<vmem>>, vector<1x128xf32>
    %18 = vector.broadcast %17 : vector<1x128xf32> to vector<8x128xf32>
    %19 = arith.addf %16, %18 : vector<8x128xf32>
    %cst_17 = arith.constant dense<0xFF800000> : vector<8xf32>
    %20 = vector.multi_reduction <maximumf>, %19, %cst_17 [1] : vector<8x128xf32> to vector<8xf32>
    %21 = vector.shape_cast %20 : vector<8xf32> to vector<8x1xf32>
    %22 = vector.broadcast %21 : vector<8x1xf32> to vector<8x128xf32>
    %23 = arith.subf %19, %22 : vector<8x128xf32>
    %24 = math.exp %23 : vector<8x128xf32>
    %cst_18 = arith.constant dense<0.000000e+00> : vector<8xf32>
    %25 = vector.multi_reduction <add>, %24, %cst_18 [1] : vector<8x128xf32> to vector<8xf32>
    %26 = vector.shape_cast %25 : vector<8xf32> to vector<8x1xf32>
    %27 = math.log %26 : vector<8x1xf32>
    %28 = vector.broadcast %27 : vector<8x1xf32> to vector<8x128xf32>
    %29 = arith.subf %23, %28 : vector<8x128xf32>
    %30 = vector.extract_strided_slice %29 {offsets = [0, 0], sizes = [8, 8], strides = [1, 1]} : vector<8x128xf32> to vector<8x8xf32>
    %c0_19 = arith.constant 0 : index
    %c0_20 = arith.constant 0 : index
    %31 = vector.load %arg8[%c0_19, %c0_20] : memref<8x8xf32, #tpu.memory_space<vmem>>, vector<8x8xf32>
    tpu.vector_store %arg8[%c0_19, %c0_20], %30 {strides = array<i32>} : memref<8x8xf32, #tpu.memory_space<vmem>>, vector<8x8xf32>,
    return
  }
  func.func @transform_0(%arg0: i32) -> (i32, i32) {
    %c0_i32 = arith.constant 0 : i32
    %c0_i32_0 = arith.constant 0 : i32
    return %arg0, %c0_i32 : i32, i32
  }
  func.func @transform_1(%arg0: i32) -> (i32, i32) {
    %c0_i32 = arith.constant 0 : i32
    %c0_i32_0 = arith.constant 0 : i32
    %c0_i32_1 = arith.constant 0 : i32
    return %c0_i32, %c0_i32_0 : i32, i32
  }
  func.func @transform_2(%arg0: i32) -> (i32, i32) {
    %c0_i32 = arith.constant 0 : i32
    %c0_i32_0 = arith.constant 0 : i32
    %c0_i32_1 = arith.constant 0 : i32
    return %c0_i32, %c0_i32_0 : i32, i32
  }
  func.func @transform_3(%arg0: i32) -> (i32, i32) {
    %c0_i32 = arith.constant 0 : i32
    %c0_i32_0 = arith.constant 0 : i32
    %c0_i32_1 = arith.constant 0 : i32
    return %c0_i32, %c0_i32_0 : i32, i32
  }
  func.func @transform_4(%arg0: i32) -> (i32, i32) {
    %c0_i32 = arith.constant 0 : i32
    %c0_i32_0 = arith.constant 0 : i32
    %c0_i32_1 = arith.constant 0 : i32
    return %c0_i32, %c0_i32_0 : i32, i32
  }
  func.func @transform_5(%arg0: i32) -> (i32, i32) {
    %c0_i32 = arith.constant 0 : i32
    %c0_i32_0 = arith.constant 0 : i32
    %c0_i32_1 = arith.constant 0 : i32
    return %c0_i32, %c0_i32_0 : i32, i32
  }
  func.func @transform_6(%arg0: i32) -> (i32, i32) {
    %c0_i32 = arith.constant 0 : i32
    %c0_i32_0 = arith.constant 0 : i32
    %c0_i32_1 = arith.constant 0 : i32
    return %c0_i32, %c0_i32_0 : i32, i32
  }
  func.func @transform_7(%arg0: i32) -> (i32, i32) {
    %c0_i32 = arith.constant 0 : i32
    %c0_i32_0 = arith.constant 0 : i32
    return %arg0, %c0_i32 : i32, i32
  }
}

</mosaic_0001>

<llo_original>
// kernel: actor_forward.1
$region0: #{actor_forward.1}
  #allocation0 [shape = 'u32[]', space=smem, size = 0x4, offset = 0x4, fixed_abs, tag = 'smem constant byte address 0x4 - core index']
  #allocation1 [shape = 'u32[144,128]{1,0:T(1,128)}', space=vmem, size = 0x12000, scoped, tag = 'internal scratch']
  %s0 = inlined_call_operand.vmem [shape: f32[8,16], index: 0, kind: input, shape index: {}]
  %s1 = inlined_call_operand.hbm [shape: f32[16,32], index: 1, kind: input, shape index: {}]
  %s2 = inlined_call_operand.vmem [shape: f32[1,32], index: 2, kind: input, shape index: {}]
  %s3 = inlined_call_operand.hbm [shape: f32[32,32], index: 3, kind: input, shape index: {}]
  %s4 = inlined_call_operand.hbm [shape: f32[1,32], index: 4, kind: input, shape index: {}]
  %s5 = inlined_call_operand.vmem [shape: f32[32,128], index: 5, kind: input, shape index: {}]
  %s6 = inlined_call_operand.hbm [shape: f32[1,128], index: 6, kind: input, shape index: {}]
  %s7 = inlined_call_operand.vmem [shape: f32[8,8], index: 7, kind: output, shape index: {}]
  %s8 = sld [smem:[#allocation0]]
  $region54: #{actor_forward.1} parent=0
    _
  %s10 = ssub.s32 1, %s8
  %s11 = scalar_select 0, %s10, %s8
  $region1: #{actor_forward.1} parent=0
    #allocation2 [shape = 'u8[8192]{0}', space=vmem, size = 0x2000, scoped, tag = 'input window, operand 1, single buffered']
    #allocation3 [shape = 's32[1]{0}', space=sflag, size = 0x4, scoped, tag = 'scoped memory for actor_forward.1']
    #allocation4 [shape = 'u8[16384]{0}', space=vmem, size = 0x4000, scoped, tag = 'input window, operand 3, single buffered']
    #allocation5 [shape = 's32[1]{0}', space=sflag, size = 0x4, scoped, tag = 'scoped memory for actor_forward.1']
    #allocation6 [shape = 'u8[512]{0}', space=vmem, size = 0x400, scoped, tag = 'input window, operand 4, single buffered']
    #allocation7 [shape = 'u8[512]{0}', space=vmem, size = 0x400, scoped, tag = 'input window, operand 6, single buffered']
    #allocation8 [shape = 's32[1]{0}', space=sflag, size = 0x4, scoped, tag = 'scoped memory for actor_forward.1']
    %12 = vsyncpa [#allocation3], 0
    %13 = vsyncpa [#allocation5], 0
    %14 = vsyncpa [#allocation8], 0
    // Predicated region
    $region2: #{actor_forward.1} parent=1 // pred_check
      _
    $region3: #{actor_forward.1} parent=1 // pred_check_branch
      %16 = sbr.rel (0) target = $region5
    $region4: #{actor_forward.1} parent=1 // pred_region
      _
    $region5: #{actor_forward.1} parent=1 // pred_fallthru
      _
    // Predicated region
    $region6: #{actor_forward.1} parent=1 // pred_check
      _
    $region7: #{actor_forward.1} parent=1 // pred_check_branch
      %18 = sbr.rel (0) target = $region9
    $region8: #{actor_forward.1} parent=1 // pred_region
      %s20 = ssub.s32 256, 256
      %21 = vsyncadd [#allocation3], %s20
      %s22 = sshll.u32 [#allocation2], 4
      %s23 = int_to_ptr.vmem [resolvable:$true] %s22
      %28 = dma.hbm_to_vmem [thread:$0]  %s1, 256, %s23, [#allocation3], 128, 128, 8
    $region9: #{actor_forward.1} parent=1 // pred_fallthru
      _
    // Predicated region
    $region10: #{actor_forward.1} parent=1 // pred_check
      _
    $region11: #{actor_forward.1} parent=1 // pred_check_branch
      %30 = sbr.rel (0) target = $region13
    $region12: #{actor_forward.1} parent=1 // pred_region
      _
    $region13: #{actor_forward.1} parent=1 // pred_fallthru
      _
    // Predicated region
    $region14: #{actor_forward.1} parent=1 // pred_check
      _
    $region15: #{actor_forward.1} parent=1 // pred_check_branch
      %32 = sbr.rel (0) target = $region17
    $region16: #{actor_forward.1} parent=1 // pred_region
      %s34 = ssub.s32 512, 512
      %35 = vsyncadd [#allocation5], %s34
      %s36 = sshll.u32 [#allocation4], 4
      %s37 = int_to_ptr.vmem [resolvable:$true] %s36
      %42 = dma.hbm_to_vmem [thread:$0]  %s3, 512, %s37, [#allocation5], 128, 128, 8
    $region17: #{actor_forward.1} parent=1 // pred_fallthru
      _
    // Predicated region
    $region18: #{actor_forward.1} parent=1 // pred_check
      _
    $region19: #{actor_forward.1} parent=1 // pred_check_branch
      %44 = sbr.rel (0) target = $region21
    $region20: #{actor_forward.1} parent=1 // pred_region
      %s46 = ssub.s32 16, 16
      %47 = vsyncadd [#allocation5], %s46
      %s49 = sshll.u32 [#allocation6], 4
      %s50 = int_to_ptr.vmem [resolvable:$true] %s49
      %52 = dma.hbm_to_vmem [thread:$0]  %s4, 16, %s50, [#allocation5]
    $region21: #{actor_forward.1} parent=1 // pred_fallthru
      _
    // Predicated region
    $region22: #{actor_forward.1} parent=1 // pred_check
      _
    $region23: #{actor_forward.1} parent=1 // pred_check_branch
      %54 = sbr.rel (0) target = $region25
    $region24: #{actor_forward.1} parent=1 // pred_region
      _
    $region25: #{actor_forward.1} parent=1 // pred_fallthru
      _
    // Predicated region
    $region26: #{actor_forward.1} parent=1 // pred_check
      _
    $region27: #{actor_forward.1} parent=1 // pred_check_branch
      %56 = sbr.rel (0) target = $region29
    $region28: #{actor_forward.1} parent=1 // pred_region
      %s58 = ssub.s32 16, 16
      %59 = vsyncadd [#allocation8], %s58
      %s61 = sshll.u32 [#allocation7], 4
      %s62 = int_to_ptr.vmem [resolvable:$true] %s61
      %64 = dma.hbm_to_vmem [thread:$0]  %s6, 16, %s62, [#allocation8]
    $region29: #{actor_forward.1} parent=1 // pred_fallthru
      _
    // Predicated region
    $region30: #{actor_forward.1} parent=1 // pred_check
      _
    $region31: #{actor_forward.1} parent=1 // pred_check_branch
      %66 = sbr.rel (0) target = $region33
    $region32: #{actor_forward.1} parent=1 // pred_region
      %67 = dma.done [#allocation3], 256
    $region33: #{actor_forward.1} parent=1 // pred_fallthru
      _
    // Predicated region
    $region34: #{actor_forward.1} parent=1 // pred_check
      _
    $region35: #{actor_forward.1} parent=1 // pred_check_branch
      %69 = sbr.rel (0) target = $region37
    $region36: #{actor_forward.1} parent=1 // pred_region
      %70 = dma.done [#allocation5], 512
    $region37: #{actor_forward.1} parent=1 // pred_fallthru
      _
    // Predicated region
    $region38: #{actor_forward.1} parent=1 // pred_check
      _
    $region39: #{actor_forward.1} parent=1 // pred_check_branch
      %72 = sbr.rel (0) target = $region41
    $region40: #{actor_forward.1} parent=1 // pred_region
      %73 = dma.done [#allocation5], 16
    $region41: #{actor_forward.1} parent=1 // pred_fallthru
      _
    // Predicated region
    $region42: #{actor_forward.1} parent=1 // pred_check
      _
    $region43: #{actor_forward.1} parent=1 // pred_check_branch
      %75 = sbr.rel (0) target = $region45
    $region44: #{actor_forward.1} parent=1 // pred_region
      %76 = dma.done [#allocation8], 16
    $region45: #{actor_forward.1} parent=1 // pred_fallthru
      _
    %v77 = vld [vmem:[%s0] sm:$0xff]
    %v78 = vld [vmem:[#allocation2] sm:$0xff]
    %v79 = vld [vmem:[#allocation2 + $0x8] sm:$0xff]
    %v80 = vld [vmem:[%s2] sm:$0x1]
    %v82 = vlaneseq
    %v83 = vshrl.u32 %v82, 7
    %v84 = vsub.s32 0, %v83
    %v85 = vrot.slane %v80, %v84
    %vm87 = vcmask 130048
    %v89 = vsel %vm87, %v77, 0
    %91 = vmatprep.subr.mxu0 0.0
    %92 = vmatpush1.msra.mxu0 %v78
    %93 = vmatprep.subr.mxu0 0.0
    %94 = vmatpush1.msra.mxu0 %v79
    %95 = vmatprep.subr.mxu0 0.0
    %96 = vmatpush1.msra.mxu0 0.0
    %97 = vmatprep.subr.mxu0 0.0
    %98 = vmatpush1.msra.mxu0 0.0
    %99 = vmatprep.subr.mxu0 0.0
    %100 = vmatpush1.msra.mxu0 0.0
    %101 = vmatprep.subr.mxu0 0.0
    %102 = vmatpush1.msra.mxu0 0.0
    %103 = vmatprep.subr.mxu0 0.0
    %104 = vmatpush1.msra.mxu0 0.0
    %105 = vmatprep.subr.mxu0 0.0
    %106 = vmatpush1.msra.mxu0 0.0
    %107 = vmatprep.subr.mxu0 0.0
    %108 = vmatpush1.msra.mxu0 0.0
    %109 = vmatprep.subr.mxu0 0.0
    %110 = vmatpush1.msra.mxu0 0.0
    %111 = vmatprep.subr.mxu0 0.0
    %112 = vmatpush1.msra.mxu0 0.0
    %113 = vmatprep.subr.mxu0 0.0
    %114 = vmatpush1.msra.mxu0 0.0
    %115 = vmatprep.subr.mxu0 0.0
    %116 = vmatpush1.msra.mxu0 0.0
    %117 = vmatprep.subr.mxu0 0.0
    %118 = vmatpush1.msra.mxu0 0.0
    %119 = vmatprep.subr.mxu0 0.0
    %120 = vmatpush1.msra.mxu0 0.0
    %121 = vmatprep.subr.mxu0 0.0
    %122 = vmatpush1.msra.mxu0 0.0
    %123 = vmatprep.subr.mxu0 0.0
    %124 = vmatpush1.msra.mxu0 0.0
    %125 = vmatprep.subr.mxu0 0.0
    %126 = vmatpush1.msra.mxu0 0.0
    %127 = vmatprep.subr.mxu0 0.0
    %128 = vmatpush1.msra.mxu0 0.0
    %129 = vmatprep.subr.mxu0 0.0
    %130 = vmatpush1.msra.mxu0 0.0
    %131 = vmatprep.subr.mxu0 0.0
    %132 = vmatpush1.msra.mxu0 0.0
    %133 = vmatprep.subr.mxu0 0.0
    %134 = vmatpush1.msra.mxu0 0.0
    %135 = vmatprep.subr.mxu0 0.0
    %136 = vmatpush1.msra.mxu0 0.0
    %137 = vmatprep.subr.mxu0 0.0
    %138 = vmatpush1.msra.mxu0 0.0
    %139 = vmatprep.subr.mxu0 0.0
    %140 = vmatpush1.msra.mxu0 0.0
    %141 = vmatprep.subr.mxu0 0.0
    %142 = vmatpush1.msra.mxu0 0.0
    %143 = vmatprep.subr.mxu0 0.0
    %144 = vmatpush1.msra.mxu0 0.0
    %145 = vmatprep.subr.mxu0 0.0
    %146 = vmatpush1.msra.mxu0 0.0
    %147 = vmatprep.subr.mxu0 0.0
    %148 = vmatpush1.msra.mxu0 0.0
    %149 = vmatprep.subr.mxu0 0.0
    %150 = vmatpush1.msra.mxu0 0.0
    %151 = vmatprep.subr.mxu0 0.0
    %152 = vmatpush1.msra.mxu0 0.0
    %153 = vmatprep.subr.mxu0 0.0
    %154 = vmatpush1.msra.mxu0 0.0
    %155 = vmatprep.mubr.f32.mxu0 0.0
    %156 = vmatmul.mubr.f32.gmra.mrb[0].mxu0 %v89
    %v157 = vpop.f32.mrb[0].mxu0
    %v158 = vadd.f32 %v85, %v157
    %v159 = vpop.f32.mrb[0].mxu0
    %160 = vdwg.mxu0
    %v161 = vmax.f32 %v158, 0.0
    %v162 = vld [vmem:[#allocation4] sm:$0xff]
    %v163 = vld [vmem:[#allocation4 + $0x8] sm:$0xff]
    %v164 = vld [vmem:[#allocation4 + $0x10] sm:$0xff]
    %v165 = vld [vmem:[#allocation4 + $0x18] sm:$0xff]
    %v166 = vld [vmem:[#allocation6] sm:$0x1]
    %v168 = vlaneseq
    %v169 = vshrl.u32 %v168, 7
    %v170 = vsub.s32 0, %v169
    %v171 = vrot.slane %v166, %v170
    %vm173 = vcmask 261120
    %v175 = vsel %vm173, %v161, 0
    %177 = vmatprep.subr.mxu0 0.0
    %178 = vmatpush1.msra.mxu0 %v162
    %179 = vmatprep.subr.mxu0 0.0
    %180 = vmatpush1.msra.mxu0 %v163
    %181 = vmatprep.subr.mxu0 0.0
    %182 = vmatpush1.msra.mxu0 %v164
    %183 = vmatprep.subr.mxu0 0.0
    %184 = vmatpush1.msra.mxu0 %v165
    %185 = vmatprep.subr.mxu0 0.0
    %186 = vmatpush1.msra.mxu0 0.0
    %187 = vmatprep.subr.mxu0 0.0
    %188 = vmatpush1.msra.mxu0 0.0
    %189 = vmatprep.subr.mxu0 0.0
    %190 = vmatpush1.msra.mxu0 0.0
    %191 = vmatprep.subr.mxu0 0.0
    %192 = vmatpush1.msra.mxu0 0.0
    %193 = vmatprep.subr.mxu0 0.0
    %194 = vmatpush1.msra.mxu0 0.0
    %195 = vmatprep.subr.mxu0 0.0
    %196 = vmatpush1.msra.mxu0 0.0
    %197 = vmatprep.subr.mxu0 0.0
    %198 = vmatpush1.msra.mxu0 0.0
    %199 = vmatprep.subr.mxu0 0.0
    %200 = vmatpush1.msra.mxu0 0.0
    %201 = vmatprep.subr.mxu0 0.0
    %202 = vmatpush1.msra.mxu0 0.0
    %203 = vmatprep.subr.mxu0 0.0
    %204 = vmatpush1.msra.mxu0 0.0
    %205 = vmatprep.subr.mxu0 0.0
    %206 = vmatpush1.msra.mxu0 0.0
    %207 = vmatprep.subr.mxu0 0.0
    %208 = vmatpush1.msra.mxu0 0.0
    %209 = vmatprep.subr.mxu0 0.0
    %210 = vmatpush1.msra.mxu0 0.0
    %211 = vmatprep.subr.mxu0 0.0
    %212 = vmatpush1.msra.mxu0 0.0
    %213 = vmatprep.subr.mxu0 0.0
    %214 = vmatpush1.msra.mxu0 0.0
    %215 = vmatprep.subr.mxu0 0.0
    %216 = vmatpush1.msra.mxu0 0.0
    %217 = vmatprep.subr.mxu0 0.0
    %218 = vmatpush1.msra.mxu0 0.0
    %219 = vmatprep.subr.mxu0 0.0
    %220 = vmatpush1.msra.mxu0 0.0
    %221 = vmatprep.subr.mxu0 0.0
    %222 = vmatpush1.msra.mxu0 0.0
    %223 = vmatprep.subr.mxu0 0.0
    %224 = vmatpush1.msra.mxu0 0.0
    %225 = vmatprep.subr.mxu0 0.0
    %226 = vmatpush1.msra.mxu0 0.0
    %227 = vmatprep.subr.mxu0 0.0
    %228 = vmatpush1.msra.mxu0 0.0
    %229 = vmatprep.subr.mxu0 0.0
    %230 = vmatpush1.msra.mxu0 0.0
    %231 = vmatprep.subr.mxu0 0.0
    %232 = vmatpush1.msra.mxu0 0.0
    %233 = vmatprep.subr.mxu0 0.0
    %234 = vmatpush1.msra.mxu0 0.0
    %235 = vmatprep.subr.mxu0 0.0
    %236 = vmatpush1.msra.mxu0 0.0
    %237 = vmatprep.subr.mxu0 0.0
    %238 = vmatpush1.msra.mxu0 0.0
    %239 = vmatprep.subr.mxu0 0.0
    %240 = vmatpush1.msra.mxu0 0.0
    %241 = vmatprep.mubr.f32.mxu0 0.0
    %242 = vmatmul.mubr.f32.gmra.mrb[0].mxu0 %v175
    %v243 = vpop.f32.mrb[0].mxu0
    %v244 = vadd.f32 %v171, %v243
    %v245 = vpop.f32.mrb[0].mxu0
    %246 = vdwg.mxu0
    %v247 = vmax.f32 %v244, 0.0
    %v248 = vld [vmem:[%s5] sm:$0xff]
    %v249 = vld [vmem:[%s5 + $0x8] sm:$0xff]
    %v250 = vld [vmem:[%s5 + $0x10] sm:$0xff]
    %v251 = vld [vmem:[%s5 + $0x18] sm:$0xff]
    %v252 = vld [vmem:[#allocation7] sm:$0x1]
    %v254 = vlaneseq
    %v255 = vshrl.u32 %v254, 7
    %v256 = vsub.s32 0, %v255
    %v257 = vrot.slane %v252, %v256
    %v260 = vsel %vm173, %v247, 0
    %262 = vmatprep.subr.mxu0 0.0
    %263 = vmatpush1.msra.mxu0 %v248
    %264 = vmatprep.subr.mxu0 0.0
    %265 = vmatpush1.msra.mxu0 %v249
    %266 = vmatprep.subr.mxu0 0.0
    %267 = vmatpush1.msra.mxu0 %v250
    %268 = vmatprep.subr.mxu0 0.0
    %269 = vmatpush1.msra.mxu0 %v251
    %270 = vmatprep.subr.mxu0 0.0
    %271 = vmatpush1.msra.mxu0 0.0
    %272 = vmatprep.subr.mxu0 0.0
    %273 = vmatpush1.msra.mxu0 0.0
    %274 = vmatprep.subr.mxu0 0.0
    %275 = vmatpush1.msra.mxu0 0.0
    %276 = vmatprep.subr.mxu0 0.0
    %277 = vmatpush1.msra.mxu0 0.0
    %278 = vmatprep.subr.mxu0 0.0
    %279 = vmatpush1.msra.mxu0 0.0
    %280 = vmatprep.subr.mxu0 0.0
    %281 = vmatpush1.msra.mxu0 0.0
    %282 = vmatprep.subr.mxu0 0.0
    %283 = vmatpush1.msra.mxu0 0.0
    %284 = vmatprep.subr.mxu0 0.0
    %285 = vmatpush1.msra.mxu0 0.0
    %286 = vmatprep.subr.mxu0 0.0
    %287 = vmatpush1.msra.mxu0 0.0
    %288 = vmatprep.subr.mxu0 0.0
    %289 = vmatpush1.msra.mxu0 0.0
    %290 = vmatprep.subr.mxu0 0.0
    %291 = vmatpush1.msra.mxu0 0.0
    %292 = vmatprep.subr.mxu0 0.0
    %293 = vmatpush1.msra.mxu0 0.0
    %294 = vmatprep.subr.mxu0 0.0
    %295 = vmatpush1.msra.mxu0 0.0
    %296 = vmatprep.subr.mxu0 0.0
    %297 = vmatpush1.msra.mxu0 0.0
    %298 = vmatprep.subr.mxu0 0.0
    %299 = vmatpush1.msra.mxu0 0.0
    %300 = vmatprep.subr.mxu0 0.0
    %301 = vmatpush1.msra.mxu0 0.0
    %302 = vmatprep.subr.mxu0 0.0
    %303 = vmatpush1.msra.mxu0 0.0
    %304 = vmatprep.subr.mxu0 0.0
    %305 = vmatpush1.msra.mxu0 0.0
    %306 = vmatprep.subr.mxu0 0.0
    %307 = vmatpush1.msra.mxu0 0.0
    %308 = vmatprep.subr.mxu0 0.0
    %309 = vmatpush1.msra.mxu0 0.0
    %310 = vmatprep.subr.mxu0 0.0
    %311 = vmatpush1.msra.mxu0 0.0
    %312 = vmatprep.subr.mxu0 0.0
    %313 = vmatpush1.msra.mxu0 0.0
    %314 = vmatprep.subr.mxu0 0.0
    %315 = vmatpush1.msra.mxu0 0.0
    %316 = vmatprep.subr.mxu0 0.0
    %317 = vmatpush1.msra.mxu0 0.0
    %318 = vmatprep.subr.mxu0 0.0
    %319 = vmatpush1.msra.mxu0 0.0
    %320 = vmatprep.subr.mxu0 0.0
    %321 = vmatpush1.msra.mxu0 0.0
    %322 = vmatprep.subr.mxu0 0.0
    %323 = vmatpush1.msra.mxu0 0.0
    %324 = vmatprep.subr.mxu0 0.0
    %325 = vmatpush1.msra.mxu0 0.0
    %326 = vmatprep.mubr.f32.mxu0 0.0
    %327 = vmatmul.mubr.f32.gmra.mrb[0].mxu0 %v260
    %v328 = vpop.f32.mrb[0].mxu0
    %v329 = vadd.f32 %v257, %v328
    %v330 = vpop.f32.mrb[0].mxu0
    %331 = vdwg.mxu0
    %332 = vmax.xlane.f32.xlu0 %v329
    %v333 = vpop.xlane.xlu0 %332
    %v334 = vsub.f32 %v329, %v333
    %v335 = vmul.f32 %v334, 1.442695
    %v336 = vpow.pop %v335
    %337 = vadd.xlane.f32.xlu0 %v336
    %v338 = vpop.xlane.xlu0 %337
    %v339 = vlog2.pop %v338
    %v340 = vmul.f32 %v339, 0.6931472
    %v341 = vsub.f32 %v334, %v340
    %vm342 = vcmask 64512
    %343 = vst.msk [vmem:[%s7] sm:$0xff] %vm342, %v341
    // Predicated region
    $region46: #{actor_forward.1} parent=1 // pred_check
      _
    $region47: #{actor_forward.1} parent=1 // pred_check_branch
      %345 = sbr.rel (0) target = $region49
    $region48: #{actor_forward.1} parent=1 // pred_region
      _
    $region49: #{actor_forward.1} parent=1 // pred_fallthru
      _
    // Predicated region
    $region50: #{actor_forward.1} parent=1 // pred_check
      _
    $region51: #{actor_forward.1} parent=1 // pred_check_branch
      %347 = sbr.rel (0) target = $region53
    $region52: #{actor_forward.1} parent=1 // pred_region
      _
    $region53: #{actor_forward.1} parent=1 // pred_fallthru
      _
    %348 = vsyncpa [#allocation3], 1
    %349 = vsyncpa [#allocation5], 1
    %350 = vsyncpa [#allocation8], 1

</llo_original>
